<compile_context>
chip_gen: v5e
topology: v5e:2x2
jax: 0.10.0
libtpu: 0.0.40
codegen_flags: <defaults>
</compile_context>

<pallas_src>
import functools

import jax
import jax.numpy as jnp
from jax.experimental import pallas as pl
from jax.experimental.pallas import tpu as pltpu


def _round_up(n, m):
    return ((n + m - 1) // m) * m


def _choose_batch_tile(B, *, tb_max=1024, sublane=8):
    """Pick (tb, B_pad) for the batch grid.

    Goals (in priority order): enough grid steps for DMA/compute overlap and
    v7x megacore sharding (>=4 when the batch allows, >=2 otherwise), tiles
    sized to the real batch so padding waste stays < 8 rows, tb a multiple of
    the f32 sublane group (8).  We do NOT force an even step count: padding an
    odd n to n+1 never shortens the v7x critical path (ceil(n/2) is unchanged)
    and only adds dead work on v5e/v6e.
    """
    if B <= sublane:
        tb = _round_up(B, sublane)
        return tb, tb
    n_steps = pl.cdiv(B, tb_max)
    if n_steps < 4:
        # Prefer 4+ steps when each step still gets a decent row count;
        # otherwise settle for 2 so the second v7x TensorCore is not idle.
        n_steps = 4 if B >= 512 else 2
    tb = _round_up(pl.cdiv(B, n_steps), sublane)
    B_pad = _round_up(B, tb)
    return tb, B_pad


def mlp_kernel(x_ref, w1_ref, b1_ref, w2_ref, b2_ref, o_ref):
    # Hot path: two MXU matmuls + bias add + ReLU, all on VMEM-resident tiles.
    h = jnp.dot(x_ref[...], w1_ref[...], preferred_element_type=jnp.float32)
    h = jnp.maximum(h + b1_ref[...], 0.0)            # (TB, H) + (1, H), ReLU
    y = jnp.dot(h, w2_ref[...], preferred_element_type=jnp.float32)
    o_ref[...] = (y + b2_ref[...]).astype(o_ref.dtype)   # (TB, D_out) store


def my_sequential_forward(x, w1, b1, w2, b2, *, tb_max=1024):
    """x: (B, D_in); w1: (D_in, H); b1: (1, H); w2: (H, D_out); b2: (1, D_out)."""
    B, D_in = x.shape
    H = w1.shape[1]
    D_out = w2.shape[1]

    tb, B_pad = _choose_batch_tile(B, tb_max=tb_max)
    x_p = jnp.pad(x, ((0, B_pad - B), (0, 0))) if B_pad != B else x

    # Note: the four weight/bias specs have constant index_maps; single-
    # buffering them (pipeline_mode=pl.Buffered(1)) would save ~150-300 KiB of
    # VMEM but is not needed at these sizes, so it is intentionally omitted.
    out_padded = pl.pallas_call(
        mlp_kernel,
        out_shape=jax.ShapeDtypeStruct((B_pad, D_out), x.dtype),
        grid=(B_pad // tb,),
        in_specs=[
            pl.BlockSpec((tb, D_in), lambda i: (i, 0)),   # x: tiled over batch
            pl.BlockSpec((D_in, H), lambda i: (0, 0)),    # w1: VMEM-resident
            pl.BlockSpec((1, H), lambda i: (0, 0)),       # b1: VMEM-resident
            pl.BlockSpec((H, D_out), lambda i: (0, 0)),   # w2: VMEM-resident
            pl.BlockSpec((1, D_out), lambda i: (0, 0)),   # b2: VMEM-resident
        ],
        out_specs=pl.BlockSpec((tb, D_out), lambda i: (i, 0)),
        compiler_params=pltpu.CompilerParams(
            dimension_semantics=("parallel",)),
    )(x_p, w1, b1, w2, b2)

    return out_padded if B_pad == B else out_padded[:B]


def init_linear_params(key, fan_in, fan_out, dtype=jnp.float32):
    """Deterministic init matching nn.Linear's default U(-1/sqrt(fan_in), +1/sqrt(fan_in)).
    Weight returned as (fan_in, fan_out) — transpose of PyTorch's storage."""
    kw, kb = jax.random.split(key)
    bound = 1.0 / (fan_in ** 0.5)
    w = jax.random.uniform(kw, (fan_in, fan_out), dtype, minval=-bound, maxval=bound)
    b = jax.random.uniform(kb, (1, fan_out), dtype, minval=-bound, maxval=bound)
    return w, b


if __name__ == "__main__":
    key = jax.random.PRNGKey(0)
    k_x, k_l1, k_l2, k_x2 = jax.random.split(key, 4)

    # MySequential(Linear(20, 256), ReLU(), Linear(256, 10))
    D_IN, H, D_OUT = 20, 256, 10
    w1, b1 = init_linear_params(k_l1, D_IN, H)
    w2, b2 = init_linear_params(k_l2, H, D_OUT)

    fwd = jax.jit(functools.partial(my_sequential_forward, tb_max=1024))

    def ref_fn(x):
        return jnp.maximum(x @ w1 + b1, 0.0) @ w2 + b2

    # Small batch (single-tile path, mirrors the original torch.rand(2, 20) use).
    B_SMALL = 8
    x_small = jax.random.uniform(k_x, (B_SMALL, D_IN), jnp.float32)
    out_small = fwd(x_small, w1, b1, w2, b2)
    jax.block_until_ready(out_small)
    assert out_small.shape == (B_SMALL, D_OUT)
    assert jnp.allclose(out_small, ref_fn(x_small), atol=1e-5, rtol=1e-5)

    # Larger batch exercising the multi-step pipelined grid + batch padding.
    B_BIG = 600   # -> tb=152, B_pad=608, grid=(4,), 8 padded rows sliced off
    x_big = jax.random.uniform(k_x2, (B_BIG, D_IN), jnp.float32)
    out_big = fwd(x_big, w1, b1, w2, b2)
    jax.block_until_ready(out_big)
    assert out_big.shape == (B_BIG, D_OUT)
    assert jnp.allclose(out_big, ref_fn(x_big), atol=1e-5, rtol=1e-5)

    print("KERNEL_OK")
</pallas_src>

<mosaic_0001>
module attributes {stable_mosaic.version = 11 : i64} {
  func.func @mlp_kernel(%arg0: i32, %arg1: memref<8x20xf32, #tpu.memory_space<vmem>>, %arg2: memref<20x256xf32, #tpu.memory_space<vmem>>, %arg3: memref<1x256xf32, #tpu.memory_space<vmem>>, %arg4: memref<256x10xf32, #tpu.memory_space<vmem>>, %arg5: memref<1x10xf32, #tpu.memory_space<vmem>>, %arg6: memref<8x10xf32, #tpu.memory_space<vmem>>) attributes {dimension_semantics = [#tpu.dimension_semantics<parallel>], iteration_bounds = array<i64: 1>, scalar_prefetch = 0 : i64, scratch_operands = 0 : i64, tpu.core_type = #tpu.core_type<tc>, window_params = [{transform_indices = @transform_0, window_bounds = array<i64: 8, 20>}, {pipeline_mode = #tpu.pipeline_mode<synchronous>, transform_indices = @transform_1, window_bounds = array<i64: 20, 256>}, {pipeline_mode = #tpu.pipeline_mode<synchronous>, transform_indices = @transform_2, window_bounds = array<i64: 1, 256>}, {pipeline_mode = #tpu.pipeline_mode<synchronous>, transform_indices = @transform_3, window_bounds = array<i64: 256, 10>}, {pipeline_mode = #tpu.pipeline_mode<synchronous>, transform_indices = @transform_4, window_bounds = array<i64: 1, 10>}, {transform_indices = @transform_5, window_bounds = array<i64: 8, 10>}]} {
    %c0 = arith.constant 0 : index
    %c0_0 = arith.constant 0 : index
    %0 = vector.load %arg1[%c0, %c0_0] : memref<8x20xf32, #tpu.memory_space<vmem>>, vector<8x20xf32>
    %c0_1 = arith.constant 0 : index
    %c0_2 = arith.constant 0 : index
    %1 = vector.load %arg2[%c0_1, %c0_2] : memref<20x256xf32, #tpu.memory_space<vmem>>, vector<20x256xf32>
    %cst = arith.constant dense<0.000000e+00> : vector<8x256xf32>
    %2 = tpu.matmul %0, %1, %cst {dimension_numbers = #tpu.dot_dimension_numbers<[1], [0], [0], [1], [0, 0, 1, 1], [], []>} : vector<8x20xf32>, vector<20x256xf32>, vector<8x256xf32> -> vector<8x256xf32>
    %c0_3 = arith.constant 0 : index
    %c0_4 = arith.constant 0 : index
    %3 = vector.load %arg3[%c0_3, %c0_4] : memref<1x256xf32, #tpu.memory_space<vmem>>, vector<1x256xf32>
    %4 = vector.broadcast %3 : vector<1x256xf32> to vector<8x256xf32>
    %5 = arith.addf %2, %4 : vector<8x256xf32>
    %cst_5 = arith.constant 0.000000e+00 : f32
    %6 = vector.broadcast %cst_5 : f32 to vector<8x256xf32>
    %7 = arith.maximumf %5, %6 : vector<8x256xf32>
    %c0_6 = arith.constant 0 : index
    %c0_7 = arith.constant 0 : index
    %8 = vector.load %arg4[%c0_6, %c0_7] : memref<256x10xf32, #tpu.memory_space<vmem>>, vector<256x10xf32>
    %cst_8 = arith.constant dense<0.000000e+00> : vector<8x10xf32>
    %9 = tpu.matmul %7, %8, %cst_8 {dimension_numbers = #tpu.dot_dimension_numbers<[1], [0], [0], [1], [0, 0, 1, 1], [], []>} : vector<8x256xf32>, vector<256x10xf32>, vector<8x10xf32> -> vector<8x10xf32>
    %c0_9 = arith.constant 0 : index
    %c0_10 = arith.constant 0 : index
    %10 = vector.load %arg5[%c0_9, %c0_10] : memref<1x10xf32, #tpu.memory_space<vmem>>, vector<1x10xf32>
    %11 = vector.broadcast %10 : vector<1x10xf32> to vector<8x10xf32>
    %12 = arith.addf %9, %11 : vector<8x10xf32>
    %c0_11 = arith.constant 0 : index
    %c0_12 = arith.constant 0 : index
    %13 = vector.load %arg6[%c0_11, %c0_12] : memref<8x10xf32, #tpu.memory_space<vmem>>, vector<8x10xf32>
    tpu.vector_store %arg6[%c0_11, %c0_12], %12 {strides = array<i32>} : memref<8x10xf32, #tpu.memory_space<vmem>>, vector<8x10xf32>,
    return
  }
  func.func @transform_0(%arg0: i32) -> (i32, i32) {
    %c0_i32 = arith.constant 0 : i32
    %c0_i32_0 = arith.constant 0 : i32
    return %arg0, %c0_i32 : i32, i32
  }
  func.func @transform_1(%arg0: i32) -> (i32, i32) {
    %c0_i32 = arith.constant 0 : i32
    %c0_i32_0 = arith.constant 0 : i32
    %c0_i32_1 = arith.constant 0 : i32
    return %c0_i32, %c0_i32_0 : i32, i32
  }
  func.func @transform_2(%arg0: i32) -> (i32, i32) {
    %c0_i32 = arith.constant 0 : i32
    %c0_i32_0 = arith.constant 0 : i32
    %c0_i32_1 = arith.constant 0 : i32
    return %c0_i32, %c0_i32_0 : i32, i32
  }
  func.func @transform_3(%arg0: i32) -> (i32, i32) {
    %c0_i32 = arith.constant 0 : i32
    %c0_i32_0 = arith.constant 0 : i32
    %c0_i32_1 = arith.constant 0 : i32
    return %c0_i32, %c0_i32_0 : i32, i32
  }
  func.func @transform_4(%arg0: i32) -> (i32, i32) {
    %c0_i32 = arith.constant 0 : i32
    %c0_i32_0 = arith.constant 0 : i32
    %c0_i32_1 = arith.constant 0 : i32
    return %c0_i32, %c0_i32_0 : i32, i32
  }
  func.func @transform_5(%arg0: i32) -> (i32, i32) {
    %c0_i32 = arith.constant 0 : i32
    %c0_i32_0 = arith.constant 0 : i32
    return %arg0, %c0_i32 : i32, i32
  }
}

</mosaic_0001>

<llo_original>
// kernel: my_sequential_forward.1
$region0: #{my_sequential_forward.1}
  #allocation0 [shape = 'u32[]', space=smem, size = 0x4, offset = 0x4, fixed_abs, tag = 'smem constant byte address 0x4 - core index']
  #allocation1 [shape = 'u32[72,128]{1,0:T(1,128)}', space=vmem, size = 0x9000, scoped, tag = 'internal scratch']
  %s0 = inlined_call_operand.vmem [shape: f32[8,20], index: 0, kind: input, shape index: {}]
  %s1 = inlined_call_operand.vmem [shape: f32[20,256], index: 1, kind: input, shape index: {}]
  %s2 = inlined_call_operand.vmem [shape: f32[1,256], index: 2, kind: input, shape index: {}]
  %s3 = inlined_call_operand.vmem [shape: f32[256,10], index: 3, kind: input, shape index: {}]
  %s4 = inlined_call_operand.vmem [shape: f32[1,10], index: 4, kind: input, shape index: {}]
  %s5 = inlined_call_operand.hbm [shape: f32[8,10], index: 5, kind: output, shape index: {}]
  %s6 = sld [smem:[#allocation0]]
  $region30: #{my_sequential_forward.1} parent=0
    _
  %s8 = ssub.s32 1, %s6
  %s9 = scalar_select 0, %s8, %s6
  $region1: #{my_sequential_forward.1} parent=0
    #allocation2 [shape = 'u8[4096]{0}', space=vmem, size = 0x1000, scoped, tag = 'output window, operand 0, single buffered']
    #allocation3 [shape = 's32[1]{0}', space=sflag, size = 0x4, scoped, tag = 'scoped memory for my_sequential_forward.1']
    %10 = vsyncpa [#allocation3], 0
    // Predicated region
    $region2: #{my_sequential_forward.1} parent=1 // pred_check
      _
    $region3: #{my_sequential_forward.1} parent=1 // pred_check_branch
      %12 = sbr.rel (0) target = $region5
    $region4: #{my_sequential_forward.1} parent=1 // pred_region
      _
    $region5: #{my_sequential_forward.1} parent=1 // pred_fallthru
      _
    // Predicated region
    $region6: #{my_sequential_forward.1} parent=1 // pred_check
      _
    $region7: #{my_sequential_forward.1} parent=1 // pred_check_branch
      %14 = sbr.rel (0) target = $region9
    $region8: #{my_sequential_forward.1} parent=1 // pred_region
      _
    $region9: #{my_sequential_forward.1} parent=1 // pred_fallthru
      _
    // Predicated region
    $region10: #{my_sequential_forward.1} parent=1 // pred_check
      _
    $region11: #{my_sequential_forward.1} parent=1 // pred_check_branch
      %16 = sbr.rel (0) target = $region13
    $region12: #{my_sequential_forward.1} parent=1 // pred_region
      _
    $region13: #{my_sequential_forward.1} parent=1 // pred_fallthru
      _
    // Predicated region
    $region14: #{my_sequential_forward.1} parent=1 // pred_check
      _
    $region15: #{my_sequential_forward.1} parent=1 // pred_check_branch
      %18 = sbr.rel (0) target = $region17
    $region16: #{my_sequential_forward.1} parent=1 // pred_region
      _
    $region17: #{my_sequential_forward.1} parent=1 // pred_fallthru
      _
    // Predicated region
    $region18: #{my_sequential_forward.1} parent=1 // pred_check
      _
    $region19: #{my_sequential_forward.1} parent=1 // pred_check_branch
      %20 = sbr.rel (0) target = $region21
    $region20: #{my_sequential_forward.1} parent=1 // pred_region
      _
    $region21: #{my_sequential_forward.1} parent=1 // pred_fallthru
      _
    %v21 = vld [vmem:[%s0] sm:$0xff]
    %v22 = vld [vmem:[%s1] sm:$0xff]
    %v23 = vld [vmem:[%s1 + $0x8] sm:$0xff]
    %v24 = vld [vmem:[%s1 + $0x10] sm:$0xff]
    %v25 = vld [vmem:[%s1 + $0x18] sm:$0xff]
    %v26 = vld [vmem:[%s1 + $0x20] sm:$0xf]
    %v27 = vld [vmem:[%s1 + $0x28] sm:$0xf]
    %v28 = vld [vmem:[%s2] sm:$0x3]
    %v30 = vperm.slane %v28, 0
    %v31 = vperm.slane %v28, 1
    %vm34 = vcmask 162816
    %v36 = vsel %vm34, %v21, 0
    %vm38 = vcmask 1043456
    %v40 = vsel %vm38, %v26, 0
    %v43 = vsel %vm38, %v27, 0
    %45 = vmatpush.msra.mxu0 0.0
    %46 = vmatpush.msra.mxu0 0.0
    %47 = vmatpush.msra.mxu0 0.0
    %48 = vmatpush.msra.mxu0 0.0
    %49 = vmatpush.msra.mxu0 0.0
    %50 = vmatpush.msra.mxu0 0.0
    %51 = vmatpush.msra.mxu0 0.0
    %52 = vmatpush.msra.mxu0 0.0
    %53 = vmatpush.msra.mxu0 0.0
    %54 = vmatpush.msra.mxu0 0.0
    %55 = vmatpush.msra.mxu0 0.0
    %56 = vmatpush.msra.mxu0 0.0
    %57 = vmatpush.msra.mxu0 0.0
    %58 = vmatpush.msra.mxu0 %v40
    %59 = vmatpush.msra.mxu0 %v24
    %60 = vmatpush.msra.mxu0 %v22
    %61 = vmatmul.f32.gmra.mxu0 %v36
    %v62 = vpop.f32.mrf.mxu0
    %v63 = vadd.f32 %v30, %v62
    %64 = vdwg.mxu0
    %65 = vmatpush.msra.mxu0 0.0
    %66 = vmatpush.msra.mxu0 0.0
    %67 = vmatpush.msra.mxu0 0.0
    %68 = vmatpush.msra.mxu0 0.0
    %69 = vmatpush.msra.mxu0 0.0
    %70 = vmatpush.msra.mxu0 0.0
    %71 = vmatpush.msra.mxu0 0.0
    %72 = vmatpush.msra.mxu0 0.0
    %73 = vmatpush.msra.mxu0 0.0
    %74 = vmatpush.msra.mxu0 0.0
    %75 = vmatpush.msra.mxu0 0.0
    %76 = vmatpush.msra.mxu0 0.0
    %77 = vmatpush.msra.mxu0 0.0
    %78 = vmatpush.msra.mxu0 %v43
    %79 = vmatpush.msra.mxu0 %v25
    %80 = vmatpush.msra.mxu0 %v23
    %81 = vmatmul.f32.gmra.mxu0 %v36
    %v82 = vpop.f32.mrf.mxu0
    %v83 = vadd.f32 %v31, %v82
    %84 = vdwg.mxu0
    %v85 = vmax.f32 %v63, 0.0
    %v86 = vmax.f32 %v83, 0.0
    %v87 = vld [vmem:[%s3] sm:$0xff]
    %v88 = vld [vmem:[%s3 + $0x8] sm:$0xff]
    %v89 = vld [vmem:[%s3 + $0x10] sm:$0xff]
    %v90 = vld [vmem:[%s3 + $0x18] sm:$0xff]
    %v91 = vld [vmem:[%s3 + $0x20] sm:$0xff]
    %v92 = vld [vmem:[%s3 + $0x28] sm:$0xff]
    %v93 = vld [vmem:[%s3 + $0x30] sm:$0xff]
    %v94 = vld [vmem:[%s3 + $0x38] sm:$0xff]
    %v95 = vld [vmem:[%s3 + $0x40] sm:$0xff]
    %v96 = vld [vmem:[%s3 + $0x48] sm:$0xff]
    %v97 = vld [vmem:[%s3 + $0x50] sm:$0xff]
    %v98 = vld [vmem:[%s3 + $0x58] sm:$0xff]
    %v99 = vld [vmem:[%s3 + $0x60] sm:$0xff]
    %v100 = vld [vmem:[%s3 + $0x68] sm:$0xff]
    %v101 = vld [vmem:[%s3 + $0x70] sm:$0xff]
    %v102 = vld [vmem:[%s3 + $0x78] sm:$0xff]
    %v103 = vld [vmem:[%s3 + $0x80] sm:$0xff]
    %v104 = vld [vmem:[%s3 + $0x88] sm:$0xff]
    %v105 = vld [vmem:[%s3 + $0x90] sm:$0xff]
    %v106 = vld [vmem:[%s3 + $0x98] sm:$0xff]
    %v107 = vld [vmem:[%s3 + $0xa0] sm:$0xff]
    %v108 = vld [vmem:[%s3 + $0xa8] sm:$0xff]
    %v109 = vld [vmem:[%s3 + $0xb0] sm:$0xff]
    %v110 = vld [vmem:[%s3 + $0xb8] sm:$0xff]
    %v111 = vld [vmem:[%s3 + $0xc0] sm:$0xff]
    %v112 = vld [vmem:[%s3 + $0xc8] sm:$0xff]
    %v113 = vld [vmem:[%s3 + $0xd0] sm:$0xff]
    %v114 = vld [vmem:[%s3 + $0xd8] sm:$0xff]
    %v115 = vld [vmem:[%s3 + $0xe0] sm:$0xff]
    %v116 = vld [vmem:[%s3 + $0xe8] sm:$0xff]
    %v117 = vld [vmem:[%s3 + $0xf0] sm:$0xff]
    %v118 = vld [vmem:[%s3 + $0xf8] sm:$0xff]
    %v119 = vld [vmem:[%s4] sm:$0x1]
    %v121 = vperm.slane %v119, 0
    %123 = vmatpush.msra.mxu0 %v102
    %124 = vmatpush.msra.mxu0 %v101
    %125 = vmatpush.msra.mxu0 %v100
    %126 = vmatpush.msra.mxu0 %v99
    %127 = vmatpush.msra.mxu0 %v98
    %128 = vmatpush.msra.mxu0 %v97
    %129 = vmatpush.msra.mxu0 %v96
    %130 = vmatpush.msra.mxu0 %v95
    %131 = vmatpush.msra.mxu0 %v94
    %132 = vmatpush.msra.mxu0 %v93
    %133 = vmatpush.msra.mxu0 %v92
    %134 = vmatpush.msra.mxu0 %v91
    %135 = vmatpush.msra.mxu0 %v90
    %136 = vmatpush.msra.mxu0 %v89
    %137 = vmatpush.msra.mxu0 %v88
    %138 = vmatpush.msra.mxu0 %v87
    %139 = vmatmul.f32.gmra.mxu0 %v85
    %v140 = vpop.f32.mrf.mxu0
    %v141 = vadd.f32 %v121, %v140
    %142 = vdwg.mxu0
    %143 = vmatpush.msra.mxu0 %v118
    %144 = vmatpush.msra.mxu0 %v117
    %145 = vmatpush.msra.mxu0 %v116
    %146 = vmatpush.msra.mxu0 %v115
    %147 = vmatpush.msra.mxu0 %v114
    %148 = vmatpush.msra.mxu0 %v113
    %149 = vmatpush.msra.mxu0 %v112
    %150 = vmatpush.msra.mxu0 %v111
    %151 = vmatpush.msra.mxu0 %v110
    %152 = vmatpush.msra.mxu0 %v109
    %153 = vmatpush.msra.mxu0 %v108
    %154 = vmatpush.msra.mxu0 %v107
    %155 = vmatpush.msra.mxu0 %v106
    %156 = vmatpush.msra.mxu0 %v105
    %157 = vmatpush.msra.mxu0 %v104
    %158 = vmatpush.msra.mxu0 %v103
    %159 = vmatmul.f32.gmra.mxu0 %v86
    %v160 = vpop.f32.mrf.mxu0
    %v161 = vadd.f32 %v141, %v160
    %162 = vdwg.mxu0
    %vm163 = vcmask 80896
    %164 = vst.msk [vmem:[#allocation2] sm:$0xff] %vm163, %v161
    // Predicated region
    $region22: #{my_sequential_forward.1} parent=1 // pred_check
      _
    $region23: #{my_sequential_forward.1} parent=1 // pred_check_branch
      %166 = sbr.rel (0) target = $region25
    $region24: #{my_sequential_forward.1} parent=1 // pred_region
      %168 = vsyncadd [#allocation3], 0
      %s170 = sshll.u32 [#allocation2], 4
      %s171 = int_to_ptr.vmem [resolvable:$true] %s170
      %s172 = sshll.u32 %s5, 4
      %s173 = int_to_ptr.hbm [resolvable:$true] %s172
      %175 = dma.vmem_to_hbm [thread:$0]  %s171, 128, %s173, [#allocation3]
    $region25: #{my_sequential_forward.1} parent=1 // pred_fallthru
      _
    // Predicated region
    $region26: #{my_sequential_forward.1} parent=1 // pred_check
      _
    $region27: #{my_sequential_forward.1} parent=1 // pred_check_branch
      %177 = sbr.rel (0) target = $region29
    $region28: #{my_sequential_forward.1} parent=1 // pred_region
      %179 = dma.done [#allocation3], 128
    $region29: #{my_sequential_forward.1} parent=1 // pred_fallthru
      _
    %180 = vsyncpa [#allocation3], 1

</llo_original>
